<compile_context>
chip_gen: v5e
topology: v5e:2x2
jax: 0.10.0
libtpu: 0.0.40
codegen_flags: <defaults>
</compile_context>

<pallas_src>
import jax
import jax.numpy as jnp
from jax.experimental import pallas as pl
from jax.experimental.pallas import tpu as pltpu


def _round_up(n, m):
    return ((n + m - 1) // m) * m


def rotary_kernel(inv_freq_ref, out_ref):
    """inv_freq_ref: (1, dim) = [inv_freq, inv_freq]; out_ref: (rows, 2*dim) = [cos | sin]."""
    rows = out_ref.shape[0]
    dim = inv_freq_ref.shape[-1]
    row0 = pl.program_id(0) * rows
    # Position index for every (row, lane) element of this block.
    t = (row0 + jax.lax.broadcasted_iota(jnp.int32, (rows, dim), 0)).astype(jnp.float32)
    angles = t * inv_freq_ref[...]                    # (rows, dim), broadcast over rows (VPU)
    # Pack [cos | sin] side by side -> one lane-dense (rows, 2*dim) store.
    out_ref[...] = jnp.concatenate(
        [jnp.cos(angles), jnp.sin(angles)], axis=-1   # EUP + XLU (separate slots)
    ).astype(out_ref.dtype)


def rotary_embedding_forward(seq_len, dim, *, base=10000.0, block_rows=512):
    """Returns (cos, sin), each of shape (1, 1, seq_len, dim), float32."""
    assert dim % 2 == 0, "rotary dim must be even"

    # __init__-time buffer: inv_freq over the half-dim, then duplicated so the
    # kernel's angle layout matches cat([freqs, freqs], -1) with a plain
    # broadcast multiply (no in-kernel gather / tiling).
    inv_freq = 1.0 / (base ** (jnp.arange(0, dim, 2, dtype=jnp.float32) / dim))  # (dim//2,)
    inv_freq2 = jnp.concatenate([inv_freq, inv_freq])[None, :]                   # (1, dim)

    # Row-block size: multiple of 8 (sublane), capped at block_rows.
    rows = max(8, min(_round_up(block_rows, 8), _round_up(seq_len, 8)))
    s_pad = _round_up(seq_len, rows)
    grid = (s_pad // rows,)

    packed = pl.pallas_call(
        rotary_kernel,
        out_shape=jax.ShapeDtypeStruct((s_pad, 2 * dim), jnp.float32),
        grid=grid,
        in_specs=[pl.BlockSpec((1, dim), lambda i: (0, 0))],
        out_specs=pl.BlockSpec((rows, 2 * dim), lambda i: (i, 0)),
        compiler_params=pltpu.CompilerParams(
            dimension_semantics=("parallel",)),      # shards row blocks across v7x TCs
    )(inv_freq2)

    cos = packed[:seq_len, :dim][None, None, :, :]
    sin = packed[:seq_len, dim:][None, None, :, :]
    return cos, sin


def rotary_embedding_reference(seq_len, dim, base=10000.0):
    inv_freq = 1.0 / (base ** (jnp.arange(0, dim, 2, dtype=jnp.float32) / dim))
    t = jnp.arange(seq_len, dtype=jnp.float32)
    freqs = jnp.einsum("i,j->ij", t, inv_freq)
    emb = jnp.concatenate([freqs, freqs], axis=-1)
    return jnp.cos(emb)[None, None, :, :], jnp.sin(emb)[None, None, :, :]


if __name__ == "__main__":
    # Small, module-consistent shapes: head dim = 64, 96 positions requested.
    seq_len, dim = 96, 64

    key = jax.random.PRNGKey(0)
    # Dummy activation tensor: the PyTorch forward only uses x for device
    # placement; its values never enter the computation.
    x = jax.random.normal(key, (1, 8, seq_len, dim), jnp.float32)

    # block_rows=32 -> grid=(3,), exercising the gridded/parallel path.
    cos, sin = rotary_embedding_forward(seq_len, dim, block_rows=32)
    cos, sin = jax.block_until_ready((cos, sin))

    cos_ref, sin_ref = rotary_embedding_reference(seq_len, dim)
    assert cos.shape == (1, 1, seq_len, dim)
    assert sin.shape == (1, 1, seq_len, dim)
    # Tolerance covers few-ulp differences between Mosaic's and XLA's f32
    # sin/cos argument reduction at angles up to ~seq_len radians.
    assert jnp.allclose(cos, cos_ref, atol=1e-4, rtol=1e-4), "cos mismatch vs reference"
    assert jnp.allclose(sin, sin_ref, atol=1e-4, rtol=1e-4), "sin mismatch vs reference"

    # Also exercise the default (single-block) path.
    cos1, sin1 = jax.block_until_ready(rotary_embedding_forward(seq_len, dim))
    assert jnp.allclose(cos1, cos_ref, atol=1e-4, rtol=1e-4)
    assert jnp.allclose(sin1, sin_ref, atol=1e-4, rtol=1e-4)

    print("KERNEL_OK")
</pallas_src>

<mosaic_0001>
module attributes {stable_mosaic.version = 11 : i64} {
  func.func @rotary_kernel(%arg0: i32, %arg1: memref<1x64xf32, #tpu.memory_space<vmem>>, %arg2: memref<32x128xf32, #tpu.memory_space<vmem>>) attributes {dimension_semantics = [#tpu.dimension_semantics<parallel>], iteration_bounds = array<i64: 3>, scalar_prefetch = 0 : i64, scratch_operands = 0 : i64, tpu.core_type = #tpu.core_type<tc>, window_params = [{pipeline_mode = #tpu.pipeline_mode<synchronous>, transform_indices = @transform_0, window_bounds = array<i64: 1, 64>}, {transform_indices = @transform_1, window_bounds = array<i64: 32, 128>}]} {
    %c32_i32 = arith.constant 32 : i32
    %0 = arith.muli %arg0, %c32_i32 : i32
    %1 = tpu.iota {dimensions = array<i32: 0>} : vector<32x64xi32>
    %2 = vector.broadcast %0 : i32 to vector<32x64xi32>
    %3 = arith.addi %2, %1 : vector<32x64xi32>
    %4 = arith.sitofp %3 : vector<32x64xi32> to vector<32x64xf32>
    %c0 = arith.constant 0 : index
    %c0_0 = arith.constant 0 : index
    %5 = vector.load %arg1[%c0, %c0_0] : memref<1x64xf32, #tpu.memory_space<vmem>>, vector<1x64xf32>
    %6 = vector.broadcast %5 : vector<1x64xf32> to vector<32x64xf32>
    %7 = arith.mulf %4, %6 : vector<32x64xf32>
    %8 = math.cos %7 : vector<32x64xf32>
    %9 = math.sin %7 : vector<32x64xf32>
    %10 = tpu.concatenate %8, %9 in 1 : vector<32x64xf32>, vector<32x64xf32> -> vector<32x128xf32>
    %c0_1 = arith.constant 0 : index
    %c0_2 = arith.constant 0 : index
    %11 = vector.load %arg2[%c0_1, %c0_2] : memref<32x128xf32, #tpu.memory_space<vmem>>, vector<32x128xf32>
    tpu.vector_store %arg2[%c0_1, %c0_2], %10 {strides = array<i32>} : memref<32x128xf32, #tpu.memory_space<vmem>>, vector<32x128xf32>,
    return
  }
  func.func @transform_0(%arg0: i32) -> (i32, i32) {
    %c0_i32 = arith.constant 0 : i32
    %c0_i32_0 = arith.constant 0 : i32
    %c0_i32_1 = arith.constant 0 : i32
    return %c0_i32, %c0_i32_0 : i32, i32
  }
  func.func @transform_1(%arg0: i32) -> (i32, i32) {
    %c0_i32 = arith.constant 0 : i32
    %c0_i32_0 = arith.constant 0 : i32
    return %arg0, %c0_i32 : i32, i32
  }
}

</mosaic_0001>

<llo_original>
// kernel: tpu_custom_call.1
$region0: #{tpu_custom_call.1}
  #allocation0 [shape = 'u32[]', space=smem, size = 0x4, offset = 0x4, fixed_abs, tag = 'smem constant byte address 0x4 - core index']
  #allocation1 [shape = 'u32[72,128]{1,0:T(1,128)}', space=vmem, size = 0x9000, scoped, tag = 'internal scratch']
  %s0 = inlined_call_operand.hbm [shape: f32[1,64], index: 0, kind: input, shape index: {}]
  %s1 = inlined_call_operand.hbm [shape: f32[96,128], index: 1, kind: output, shape index: {}]
  %s2 = sld [smem:[#allocation0]]
  $region41: #{tpu_custom_call.1} parent=0
    _
  %s4 = ssub.s32 1, %s2
  %s5 = scalar_select 0, %s4, %s2
  $region1: #{tpu_custom_call.1} parent=0
    #allocation2 [shape = 'u8[512]{0}', space=vmem, size = 0x400, scoped, tag = 'input window, operand 0, single buffered']
    #allocation3 [shape = 's32[2]{0}', space=sflag, size = 0x8, scoped, tag = 'scoped memory for tpu_custom_call.1']
    #allocation4 [shape = 's32[2]{0}', space=sflag, size = 0x8, scoped, tag = 'scoped memory for tpu_custom_call.1']
    #allocation5 [shape = 'u8[32768]{0}', space=vmem, size = 0x8000, scoped, tag = 'output window, operand 0']
    %6 = vsyncpa [#allocation3], 0
    %7 = vsyncpa [#allocation4], 0
    %s8 = scalar_lea.sflag [#allocation4], 1
    %9 = vsyncpa %s8, 0
    loop: start=0, step=1, limit=5
    $region2: #{tpu_custom_call.1} parent=1 // loop_pre_header
      _
    $region3: #{tpu_custom_call.1} parent=1 // loop_header
      %s11 = sphi 0, %s15
      %p12 = scmp.ge.s32.totalorder %s11, 5
      %s19 = sphi 0, %s19
      %s21 = sphi 0, %s19
      %s22 = sphi 0, %s21
      %s36 = sphi 0, %s22
      %s42 = sphi 0, %s44
      %s45 = sphi 0, %s42
      %s46 = sphi 0, %s45
      %s62 = sphi 0, %s46
    $region4: #{tpu_custom_call.1} parent=1 // loop_header_branch
      %14 = sbr.rel (%p12) target = $region8
    $region5: #{tpu_custom_call.1} parent=1 // loop_body
      %s16 = ssub.s32 %s11, 1
      %s17 = ssub.s32 %s11, 2
      %s18 = sadd.s32 %s11, 1
      %s20 = sadd.s32 %s19, 1
      %p23 = scmp.eq.s32.totalorder %s11, 2
      %p24 = scmp.ne.s32.totalorder %s19, %s21
      %p25 = scmp.eq.s32.totalorder %s11, 0
      %p26 = por %p24, %p25
      %p27 = scmp.ne.s32.totalorder %s19, %s21
      %p28 = scmp.eq.s32.totalorder %s16, 2
      %p29 = por %p27, %p28
      %p30 = scmp.ne.s32.totalorder %s21, %s22
      %p31 = scmp.eq.s32.totalorder %s16, 0
      %p32 = por %p30, %p31
      %p33 = scmp.ne.s32.totalorder %s21, %s22
      %p34 = scmp.eq.s32.totalorder %s17, 2
      %p35 = por %p33, %p34
      %p37 = scmp.ne.s32.totalorder %s22, %s36
      %p38 = scmp.eq.s32.totalorder %s17, 0
      %p39 = por %p37, %p38
      %s40 = ssub.s32 %s11, %s18
      %p41 = scmp.eq.s32.totalorder %s40, 0
      %s43 = sadd.s32 %s42, 1
      %s44 = scalar_select %p41, %s42, %s43
      %p47 = pneg %p41
      %p48 = scmp.eq.s32.totalorder %s11, 2
      %p49 = por %p47, %p48
      %p50 = scmp.ne.s32.totalorder %s42, %s45
      %p51 = scmp.eq.s32.totalorder %s11, 0
      %p52 = por %p50, %p51
      %p53 = scmp.ne.s32.totalorder %s42, %s45
      %p54 = scmp.eq.s32.totalorder %s16, 2
      %p55 = por %p53, %p54
      %p56 = scmp.ne.s32.totalorder %s45, %s46
      %p57 = scmp.eq.s32.totalorder %s16, 0
      %p58 = por %p56, %p57
      %p59 = scmp.ne.s32.totalorder %s45, %s46
      %p60 = scmp.eq.s32.totalorder %s17, 2
      %p61 = por %p59, %p60
      %p63 = scmp.ne.s32.totalorder %s46, %s62
      %p64 = scmp.eq.s32.totalorder %s17, 0
      %p65 = por %p63, %p64
      %p66 = scmp.le.s32.totalorder 1, %s11
      %p67 = scmp.lt.s32.totalorder %s11, 4
      %p68 = pnand %p66, %p67
      %p69 = pneg %p68
      // Predicated region
      $region9: #{tpu_custom_call.1} parent=5 // pred_check
        _
      $region10: #{tpu_custom_call.1} parent=5 // pred_check_branch
        %71 = sbr.rel (%p68) target = $region12
      $region11: #{tpu_custom_call.1} parent=5 // pred_region
        %s72 = ssub.s32 %s11, 1
        // Predicated region
        $region13: #{tpu_custom_call.1} parent=11 // pred_check
          %p73 = pneg %p32
        $region14: #{tpu_custom_call.1} parent=11 // pred_check_branch
          %75 = sbr.rel (%p73) target = $region16
        $region15: #{tpu_custom_call.1} parent=11 // pred_region
          %77 = vsyncadd [#allocation3], 0
          %s79 = sshll.u32 %s0, 4
          %s80 = int_to_ptr.hbm [resolvable:$true] %s79
          %s81 = sshll.u32 [#allocation2], 4
          %s82 = int_to_ptr.vmem [resolvable:$true] %s81
          %84 = dma.hbm_to_vmem [thread:$0]  %s80, 16, %s82, [#allocation3]
        $region16: #{tpu_custom_call.1} parent=11 // pred_fallthru
          _
      $region12: #{tpu_custom_call.1} parent=5 // pred_fallthru
        _
      %p85 = scmp.lt.s32.totalorder %s11, 3
      // Predicated region
      $region17: #{tpu_custom_call.1} parent=5 // pred_check
        %p86 = pneg %p85
      $region18: #{tpu_custom_call.1} parent=5 // pred_check_branch
        %88 = sbr.rel (%p86) target = $region20
      $region19: #{tpu_custom_call.1} parent=5 // pred_region
        _
      $region20: #{tpu_custom_call.1} parent=5 // pred_fallthru
        _
      %p89 = scmp.le.s32.totalorder 1, %s11
      %p90 = scmp.lt.s32.totalorder %s11, 4
      %p91 = pnand %p89, %p90
      %p92 = pneg %p91
      // Predicated region
      $region21: #{tpu_custom_call.1} parent=5 // pred_check
        _
      $region22: #{tpu_custom_call.1} parent=5 // pred_check_branch
        %94 = sbr.rel (%p91) target = $region24
      $region23: #{tpu_custom_call.1} parent=5 // pred_region
        %s95 = ssub.s32 %s11, 1
        // Predicated region
        $region25: #{tpu_custom_call.1} parent=23 // pred_check
          %p96 = pneg %p32
        $region26: #{tpu_custom_call.1} parent=23 // pred_check_branch
          %98 = sbr.rel (%p96) target = $region28
        $region27: #{tpu_custom_call.1} parent=23 // pred_region
          %100 = dma.done [#allocation3], 16
        $region28: #{tpu_custom_call.1} parent=23 // pred_fallthru
          _
        %p101 = pneg %p32
        %p102 = pneg %p29
        %p103 = pneg %p58
        %p104 = pneg %p55
        %s105 = sand.u32 %s45, 1
        %s106 = scalar_lea.sflag [#allocation4], %s105
        %s107 = sand.u32 %s45, 1
        %s108 = smul.addr %s107, 32
        %s109 = scalar_lea.vmem [#allocation5], %s108
        %s110 = smul.u32 4, %s16
        %s111 = smul.u32 %s16, 32
        %v112 = vlaneseq
        %v113 = vshrl.u32 %v112, 7
        %v114 = vadd.s32 %v113, 8
        %v115 = vadd.s32 %v113, 16
        %v116 = vadd.s32 %v113, 24
        %v117 = vstv %s111
        %v118 = vadd.s32 %v117, %v113
        %v119 = vadd.s32 %v117, %v114
        %v120 = vadd.s32 %v117, %v115
        %v121 = vadd.s32 %v117, %v116
        %v122 = vcvt.s32.f32 %v118
        %v123 = vcvt.s32.f32 %v119
        %v124 = vcvt.s32.f32 %v120
        %v125 = vcvt.s32.f32 %v121
        %v126 = vld [vmem:[#allocation2] sm:$0x1]
        %v128 = vperm.slane %v126, 0
        %v130 = vmul.f32 %v122, %v128
        %v131 = vmul.f32 %v123, %v128
        %v132 = vmul.f32 %v124, %v128
        %v133 = vmul.f32 %v125, %v128
        %v134 = vand.u32 2147483647, %v130
        %vm135 = vcmp.le.f32.partialorder %v134, 0.7853982
        %vm136 = vcmp.lt.s32.totalorder %v130, 0
        %v137 = vand.u32 %v130, 2139095040
        %v138 = vshrl.u32 %v137, 23
        %v139 = vsub.s32 %v138, 127
        %v140 = vand.u32 2147483647, %v130
        %v141 = vand.u32 %v140, 8388607
        %v142 = vor.u32 %v141, 8388608
        %v143 = vsub.s32 0, %v142
        %v144 = vadd.s32 %v139, 1
        %vm145 = vcmp.gt.s32.totalorder %v144, 0
        %v146 = vsel %vm145, %v144, 0
        %v147 = vshrl.u32 %v146, 5
        %v148 = vand.u32 %v146, 31
        %v149 = vsub.s32 32, %v148
        %v150 = vshrl.u32 683565275, %v149
        %v151 = vshll.u32 683565275, %v148
        %v152 = vshrl.u32 2475754826, %v149
        %v153 = vor.u32 %v151, %v152
        %v154 = vshll.u32 2475754826, %v148
        %v155 = vshrl.u32 2131351028, %v149
        %v156 = vor.u32 %v154, %v155
        %v157 = vshll.u32 2131351028, %v148
        %v158 = vshrl.u32 2102212464, %v149
        %v159 = vor.u32 %v157, %v158
        %v160 = vshll.u32 2102212464, %v148
        %v161 = vshrl.u32 920167782, %v149
        %v162 = vor.u32 %v160, %v161
        %v163 = vshll.u32 920167782, %v148
        %v164 = vshrl.u32 1326507024, %v149
        %v165 = vor.u32 %v163, %v164
        %vm166 = vcmp.lt.s32.totalorder %v147, 1
        %vm167 = vcmp.lt.s32.totalorder %v147, 2
        %vm168 = vcmp.lt.s32.totalorder %v147, 3
        %vm169 = vcmp.lt.s32.totalorder %v147, 4
        %v170 = vsel %vm166, %v150, %v153
        %v171 = vsel %vm169, %v159, 2102212464
        %v172 = vsel %vm168, %v156, %v171
        %v173 = vsel %vm167, %v170, %v172
        %v174 = vsel %vm166, %v153, %v156
        %v175 = vsel %vm169, %v162, 920167782
        %v176 = vsel %vm168, %v159, %v175
        %v177 = vsel %vm167, %v174, %v176
        %v178 = vsel %vm166, %v156, %v159
        %v179 = vsel %vm169, %v165, 1326507024
        %v180 = vsel %vm168, %v162, %v179
        %v181 = vsel %vm167, %v178, %v180
        %v182 = vshll.u32 %v142, 8
        %v183 = vand.u32 %v182, 65535
        %v184 = vshrl.u32 %v182, 16
        %v185 = vand.u32 %v181, 65535
        %v186 = vshrl.u32 %v181, 16
        %v187 = vmul.u32 %v183, %v185
        %v188 = vmul.u32 %v183, %v186
        %v189 = vmul.u32 %v184, %v185
        %v190 = vmul.u32 %v184, %v186
        %v191 = vshll.u32 %v188, 16
        %v192 = vshrl.u32 %v188, 16
        %v193 = vshll.u32 %v189, 16
        %v194 = vshrl.u32 %v189, 16
        %vm195 = vc.u32 %v187, %v191
        %v196 = vsel %vm195, 1, 0
        %v197 = vadd.s32 %v187, %v191
        %v198 = vadd.s32 %v190, %v196
        %vm199 = vc.u32 %v197, %v193
        %v200 = vsel %vm199, 1, 0
        %v201 = vadd.s32 %v197, %v193
        %v202 = vadd.s32 %v198, %v200
        %v203 = vadd.s32 %v202, %v192
        %v204 = vadd.s32 %v203, %v194
        %v205 = vand.u32 %v182, 65535
        %v206 = vshrl.u32 %v182, 16
        %v207 = vand.u32 %v177, 65535
        %v208 = vshrl.u32 %v177, 16
        %v209 = vmul.u32 %v205, %v207
        %v210 = vmul.u32 %v205, %v208
        %v211 = vmul.u32 %v206, %v207
        %v212 = vmul.u32 %v206, %v208
        %v213 = vshll.u32 %v210, 16
        %v214 = vshrl.u32 %v210, 16
        %v215 = vshll.u32 %v211, 16
        %v216 = vshrl.u32 %v211, 16
        %vm217 = vc.u32 %v209, %v213
        %v218 = vsel %vm217, 1, 0
        %v219 = vadd.s32 %v209, %v213
        %v220 = vadd.s32 %v212, %v218
        %vm221 = vc.u32 %v219, %v215
        %v222 = vsel %vm221, 1, 0
        %v223 = vadd.s32 %v219, %v215
        %v224 = vadd.s32 %v220, %v222
        %v225 = vadd.s32 %v224, %v214
        %v226 = vadd.s32 %v225, %v216
        %v227 = vmul.u32 %v182, %v173
        %v228 = vadd.s32 %v204, %v223
        %vm229 = vc.u32 %v204, %v223
        %v230 = vadd.s32 %v226, 1
        %v231 = vsel %vm229, %v230, %v226
        %v232 = vadd.s32 %v227, %v231
        %v233 = vadd.s32 %v232, 536870912
        %v234 = vshrl.u32 %v233, 30
        %v235 = vshll.u32 %v234, 30
        %v236 = vsub.s32 %v232, %v235
        %vm237 = vcmp.lt.s32.totalorder %v236, 0
        %v238 = vsub.s32 0, %v236
        %v239 = vsel %vm237, %v238, %v236
        %v240 = vclz %v239
        %v241 = vsub.s32 %v240, 2
        %vm242 = vcmp.gt.s32.totalorder 0, %v241
        %v243 = vsel %vm242, 0, %v241
        %v244 = vsub.s32 32, %v243
        %v245 = vshll.u32 %v236, %v243
        %v246 = vshrl.u32 %v228, %v244
        %v247 = vor.u32 %v245, %v246
        %v248 = vsub.s32 4294967266, %v243
        %v249 = vadd.s32 %v248, 127
        %v250 = vshll.u32 %v249, 23
        %v251 = vor.u32 4788187, %v250
        %v252 = vand.u32 2147483647, %v251
        %v254 = vcvt.s32.f32 %v247
        %v255 = vmul.f32 %v254, %v252
        %v256 = vxor.u32 %v255, 2147483648
        %v257 = vsel %vm136, %v256, %v255
        %v258 = vsub.s32 4, %v234
        %v259 = vsel %vm136, %v258, %v234
        %v260 = vsel %vm135, %v130, %v257
        %v261 = vsel %vm135, 0, %v259
        %v262 = vmul.f32 %v260, %v260
        %v263 = vmul.f32 %v262, -0.001358992
        %v264 = vadd.f32 %v263, 0.041655596
        %v265 = vmul.f32 %v262, %v264
        %v266 = vadd.f32 %v265, -0.4999988
        %v267 = vmul.f32 %v262, %v266
        %v268 = vadd.f32 1.0, %v267
        %v269 = vmul.f32 %v260, %v260
        %v270 = vmul.f32 %v269, -0.00019511016
        %v271 = vadd.f32 %v270, 0.008332121
        %v272 = vmul.f32 %v269, %v271
        %v273 = vadd.f32 %v272, -0.16666654
        %v274 = vmul.f32 %v269, %v273
        %v275 = vadd.f32 %v274, 1.0
        %v276 = vmul.f32 %v275, %v260
        %vm277 = vweird.f32 %v130
        %v278 = vand.u32 %v261, 3
        %vm279 = vcmp.lt.s32.totalorder %v278, 2
        %vm280 = vcmp.eq.s32.totalorder %v278, 0
        %v281 = vxor.u32 %v276, 2147483648
        %v282 = vsel %vm280, %v268, %v281
        %vm283 = vcmp.eq.s32.totalorder %v278, 2
        %v284 = vxor.u32 %v268, 2147483648
        %v285 = vsel %vm283, %v284, %v276
        %v286 = vsel %vm279, %v282, %v285
        %v287 = vsel %vm277, nan, %v286
        %v288 = vand.u32 2147483647, %v131
        %vm289 = vcmp.le.f32.partialorder %v288, 0.7853982
        %vm290 = vcmp.lt.s32.totalorder %v131, 0
        %v291 = vand.u32 %v131, 2139095040
        %v292 = vshrl.u32 %v291, 23
        %v293 = vsub.s32 %v292, 127
        %v294 = vand.u32 2147483647, %v131
        %v295 = vand.u32 %v294, 8388607
        %v296 = vor.u32 %v295, 8388608
        %v297 = vsub.s32 0, %v296
        %v298 = vadd.s32 %v293, 1
        %vm299 = vcmp.gt.s32.totalorder %v298, 0
        %v300 = vsel %vm299, %v298, 0
        %v301 = vshrl.u32 %v300, 5
        %v302 = vand.u32 %v300, 31
        %v303 = vsub.s32 32, %v302
        %v304 = vshrl.u32 683565275, %v303
        %v305 = vshll.u32 683565275, %v302
        %v306 = vshrl.u32 2475754826, %v303
        %v307 = vor.u32 %v305, %v306
        %v308 = vshll.u32 2475754826, %v302
        %v309 = vshrl.u32 2131351028, %v303
        %v310 = vor.u32 %v308, %v309
        %v311 = vshll.u32 2131351028, %v302
        %v312 = vshrl.u32 2102212464, %v303
        %v313 = vor.u32 %v311, %v312
        %v314 = vshll.u32 2102212464, %v302
        %v315 = vshrl.u32 920167782, %v303
        %v316 = vor.u32 %v314, %v315
        %v317 = vshll.u32 920167782, %v302
        %v318 = vshrl.u32 1326507024, %v303
        %v319 = vor.u32 %v317, %v318
        %vm320 = vcmp.lt.s32.totalorder %v301, 1
        %vm321 = vcmp.lt.s32.totalorder %v301, 2
        %vm322 = vcmp.lt.s32.totalorder %v301, 3
        %vm323 = vcmp.lt.s32.totalorder %v301, 4
        %v324 = vsel %vm320, %v304, %v307
        %v325 = vsel %vm323, %v313, 2102212464
        %v326 = vsel %vm322, %v310, %v325
        %v327 = vsel %vm321, %v324, %v326
        %v328 = vsel %vm320, %v307, %v310
        %v329 = vsel %vm323, %v316, 920167782
        %v330 = vsel %vm322, %v313, %v329
        %v331 = vsel %vm321, %v328, %v330
        %v332 = vsel %vm320, %v310, %v313
        %v333 = vsel %vm323, %v319, 1326507024
        %v334 = vsel %vm322, %v316, %v333
        %v335 = vsel %vm321, %v332, %v334
        %v336 = vshll.u32 %v296, 8
        %v337 = vand.u32 %v336, 65535
        %v338 = vshrl.u32 %v336, 16
        %v339 = vand.u32 %v335, 65535
        %v340 = vshrl.u32 %v335, 16
        %v341 = vmul.u32 %v337, %v339
        %v342 = vmul.u32 %v337, %v340
        %v343 = vmul.u32 %v338, %v339
        %v344 = vmul.u32 %v338, %v340
        %v345 = vshll.u32 %v342, 16
        %v346 = vshrl.u32 %v342, 16
        %v347 = vshll.u32 %v343, 16
        %v348 = vshrl.u32 %v343, 16
        %vm349 = vc.u32 %v341, %v345
        %v350 = vsel %vm349, 1, 0
        %v351 = vadd.s32 %v341, %v345
        %v352 = vadd.s32 %v344, %v350
        %vm353 = vc.u32 %v351, %v347
        %v354 = vsel %vm353, 1, 0
        %v355 = vadd.s32 %v351, %v347
        %v356 = vadd.s32 %v352, %v354
        %v357 = vadd.s32 %v356, %v346
        %v358 = vadd.s32 %v357, %v348
        %v359 = vand.u32 %v336, 65535
        %v360 = vshrl.u32 %v336, 16
        %v361 = vand.u32 %v331, 65535
        %v362 = vshrl.u32 %v331, 16
        %v363 = vmul.u32 %v359, %v361
        %v364 = vmul.u32 %v359, %v362
        %v365 = vmul.u32 %v360, %v361
        %v366 = vmul.u32 %v360, %v362
        %v367 = vshll.u32 %v364, 16
        %v368 = vshrl.u32 %v364, 16
        %v369 = vshll.u32 %v365, 16
        %v370 = vshrl.u32 %v365, 16
        %vm371 = vc.u32 %v363, %v367
        %v372 = vsel %vm371, 1, 0
        %v373 = vadd.s32 %v363, %v367
        %v374 = vadd.s32 %v366, %v372
        %vm375 = vc.u32 %v373, %v369
        %v376 = vsel %vm375, 1, 0
        %v377 = vadd.s32 %v373, %v369
        %v378 = vadd.s32 %v374, %v376
        %v379 = vadd.s32 %v378, %v368
        %v380 = vadd.s32 %v379, %v370
        %v381 = vmul.u32 %v336, %v327
        %v382 = vadd.s32 %v358, %v377
        %vm383 = vc.u32 %v358, %v377
        %v384 = vadd.s32 %v380, 1
        %v385 = vsel %vm383, %v384, %v380
        %v386 = vadd.s32 %v381, %v385
        %v387 = vadd.s32 %v386, 536870912
        %v388 = vshrl.u32 %v387, 30
        %v389 = vshll.u32 %v388, 30
        %v390 = vsub.s32 %v386, %v389
        %vm391 = vcmp.lt.s32.totalorder %v390, 0
        %v392 = vsub.s32 0, %v390
        %v393 = vsel %vm391, %v392, %v390
        %v394 = vclz %v393
        %v395 = vsub.s32 %v394, 2
        %vm396 = vcmp.gt.s32.totalorder 0, %v395
        %v397 = vsel %vm396, 0, %v395
        %v398 = vsub.s32 32, %v397
        %v399 = vshll.u32 %v390, %v397
        %v400 = vshrl.u32 %v382, %v398
        %v401 = vor.u32 %v399, %v400
        %v402 = vsub.s32 4294967266, %v397
        %v403 = vadd.s32 %v402, 127
        %v404 = vshll.u32 %v403, 23
        %v405 = vor.u32 4788187, %v404
        %v406 = vand.u32 2147483647, %v405
        %v408 = vcvt.s32.f32 %v401
        %v409 = vmul.f32 %v408, %v406
        %v410 = vxor.u32 %v409, 2147483648
        %v411 = vsel %vm290, %v410, %v409
        %v412 = vsub.s32 4, %v388
        %v413 = vsel %vm290, %v412, %v388
        %v414 = vsel %vm289, %v131, %v411
        %v415 = vsel %vm289, 0, %v413
        %v416 = vmul.f32 %v414, %v414
        %v417 = vmul.f32 %v416, -0.001358992
        %v418 = vadd.f32 %v417, 0.041655596
        %v419 = vmul.f32 %v416, %v418
        %v420 = vadd.f32 %v419, -0.4999988
        %v421 = vmul.f32 %v416, %v420
        %v422 = vadd.f32 1.0, %v421
        %v423 = vmul.f32 %v414, %v414
        %v424 = vmul.f32 %v423, -0.00019511016
        %v425 = vadd.f32 %v424, 0.008332121
        %v426 = vmul.f32 %v423, %v425
        %v427 = vadd.f32 %v426, -0.16666654
        %v428 = vmul.f32 %v423, %v427
        %v429 = vadd.f32 %v428, 1.0
        %v430 = vmul.f32 %v429, %v414
        %vm431 = vweird.f32 %v131
        %v432 = vand.u32 %v415, 3
        %vm433 = vcmp.lt.s32.totalorder %v432, 2
        %vm434 = vcmp.eq.s32.totalorder %v432, 0
        %v435 = vxor.u32 %v430, 2147483648
        %v436 = vsel %vm434, %v422, %v435
        %vm437 = vcmp.eq.s32.totalorder %v432, 2
        %v438 = vxor.u32 %v422, 2147483648
        %v439 = vsel %vm437, %v438, %v430
        %v440 = vsel %vm433, %v436, %v439
        %v441 = vsel %vm431, nan, %v440
        %v442 = vand.u32 2147483647, %v132
        %vm443 = vcmp.le.f32.partialorder %v442, 0.7853982
        %vm444 = vcmp.lt.s32.totalorder %v132, 0
        %v445 = vand.u32 %v132, 2139095040
        %v446 = vshrl.u32 %v445, 23
        %v447 = vsub.s32 %v446, 127
        %v448 = vand.u32 2147483647, %v132
        %v449 = vand.u32 %v448, 8388607
        %v450 = vor.u32 %v449, 8388608
        %v451 = vsub.s32 0, %v450
        %v452 = vadd.s32 %v447, 1
        %vm453 = vcmp.gt.s32.totalorder %v452, 0
        %v454 = vsel %vm453, %v452, 0
        %v455 = vshrl.u32 %v454, 5
        %v456 = vand.u32 %v454, 31
        %v457 = vsub.s32 32, %v456
        %v458 = vshrl.u32 683565275, %v457
        %v459 = vshll.u32 683565275, %v456
        %v460 = vshrl.u32 2475754826, %v457
        %v461 = vor.u32 %v459, %v460
        %v462 = vshll.u32 2475754826, %v456
        %v463 = vshrl.u32 2131351028, %v457
        %v464 = vor.u32 %v462, %v463
        %v465 = vshll.u32 2131351028, %v456
        %v466 = vshrl.u32 2102212464, %v457
        %v467 = vor.u32 %v465, %v466
        %v468 = vshll.u32 2102212464, %v456
        %v469 = vshrl.u32 920167782, %v457
        %v470 = vor.u32 %v468, %v469
        %v471 = vshll.u32 920167782, %v456
        %v472 = vshrl.u32 1326507024, %v457
        %v473 = vor.u32 %v471, %v472
        %vm474 = vcmp.lt.s32.totalorder %v455, 1
        %vm475 = vcmp.lt.s32.totalorder %v455, 2
        %vm476 = vcmp.lt.s32.totalorder %v455, 3
        %vm477 = vcmp.lt.s32.totalorder %v455, 4
        %v478 = vsel %vm474, %v458, %v461
        %v479 = vsel %vm477, %v467, 2102212464
        %v480 = vsel %vm476, %v464, %v479
        %v481 = vsel %vm475, %v478, %v480
        %v482 = vsel %vm474, %v461, %v464
        %v483 = vsel %vm477, %v470, 920167782
        %v484 = vsel %vm476, %v467, %v483
        %v485 = vsel %vm475, %v482, %v484
        %v486 = vsel %vm474, %v464, %v467
        %v487 = vsel %vm477, %v473, 1326507024
        %v488 = vsel %vm476, %v470, %v487
        %v489 = vsel %vm475, %v486, %v488
        %v490 = vshll.u32 %v450, 8
        %v491 = vand.u32 %v490, 65535
        %v492 = vshrl.u32 %v490, 16
        %v493 = vand.u32 %v489, 65535
        %v494 = vshrl.u32 %v489, 16
        %v495 = vmul.u32 %v491, %v493
        %v496 = vmul.u32 %v491, %v494
        %v497 = vmul.u32 %v492, %v493
        %v498 = vmul.u32 %v492, %v494
        %v499 = vshll.u32 %v496, 16
        %v500 = vshrl.u32 %v496, 16
        %v501 = vshll.u32 %v497, 16
        %v502 = vshrl.u32 %v497, 16
        %vm503 = vc.u32 %v495, %v499
        %v504 = vsel %vm503, 1, 0
        %v505 = vadd.s32 %v495, %v499
        %v506 = vadd.s32 %v498, %v504
        %vm507 = vc.u32 %v505, %v501
        %v508 = vsel %vm507, 1, 0
        %v509 = vadd.s32 %v505, %v501
        %v510 = vadd.s32 %v506, %v508
        %v511 = vadd.s32 %v510, %v500
        %v512 = vadd.s32 %v511, %v502
        %v513 = vand.u32 %v490, 65535
        %v514 = vshrl.u32 %v490, 16
        %v515 = vand.u32 %v485, 65535
        %v516 = vshrl.u32 %v485, 16
        %v517 = vmul.u32 %v513, %v515
        %v518 = vmul.u32 %v513, %v516
        %v519 = vmul.u32 %v514, %v515
        %v520 = vmul.u32 %v514, %v516
        %v521 = vshll.u32 %v518, 16
        %v522 = vshrl.u32 %v518, 16
        %v523 = vshll.u32 %v519, 16
        %v524 = vshrl.u32 %v519, 16
        %vm525 = vc.u32 %v517, %v521
        %v526 = vsel %vm525, 1, 0
        %v527 = vadd.s32 %v517, %v521
        %v528 = vadd.s32 %v520, %v526
        %vm529 = vc.u32 %v527, %v523
        %v530 = vsel %vm529, 1, 0
        %v531 = vadd.s32 %v527, %v523
        %v532 = vadd.s32 %v528, %v530
        %v533 = vadd.s32 %v532, %v522
        %v534 = vadd.s32 %v533, %v524
        %v535 = vmul.u32 %v490, %v481
        %v536 = vadd.s32 %v512, %v531
        %vm537 = vc.u32 %v512, %v531
        %v538 = vadd.s32 %v534, 1
        %v539 = vsel %vm537, %v538, %v534
        %v540 = vadd.s32 %v535, %v539
        %v541 = vadd.s32 %v540, 536870912
        %v542 = vshrl.u32 %v541, 30
        %v543 = vshll.u32 %v542, 30
        %v544 = vsub.s32 %v540, %v543
        %vm545 = vcmp.lt.s32.totalorder %v544, 0
        %v546 = vsub.s32 0, %v544
        %v547 = vsel %vm545, %v546, %v544
        %v548 = vclz %v547
        %v549 = vsub.s32 %v548, 2
        %vm550 = vcmp.gt.s32.totalorder 0, %v549
        %v551 = vsel %vm550, 0, %v549
        %v552 = vsub.s32 32, %v551
        %v553 = vshll.u32 %v544, %v551
        %v554 = vshrl.u32 %v536, %v552
        %v555 = vor.u32 %v553, %v554
        %v556 = vsub.s32 4294967266, %v551
        %v557 = vadd.s32 %v556, 127
        %v558 = vshll.u32 %v557, 23
        %v559 = vor.u32 4788187, %v558
        %v560 = vand.u32 2147483647, %v559
        %v562 = vcvt.s32.f32 %v555
        %v563 = vmul.f32 %v562, %v560
        %v564 = vxor.u32 %v563, 2147483648
        %v565 = vsel %vm444, %v564, %v563
        %v566 = vsub.s32 4, %v542
        %v567 = vsel %vm444, %v566, %v542
        %v568 = vsel %vm443, %v132, %v565
        %v569 = vsel %vm443, 0, %v567
        %v570 = vmul.f32 %v568, %v568
        %v571 = vmul.f32 %v570, -0.001358992
        %v572 = vadd.f32 %v571, 0.041655596
        %v573 = vmul.f32 %v570, %v572
        %v574 = vadd.f32 %v573, -0.4999988
        %v575 = vmul.f32 %v570, %v574
        %v576 = vadd.f32 1.0, %v575
        %v577 = vmul.f32 %v568, %v568
        %v578 = vmul.f32 %v577, -0.00019511016
        %v579 = vadd.f32 %v578, 0.008332121
        %v580 = vmul.f32 %v577, %v579
        %v581 = vadd.f32 %v580, -0.16666654
        %v582 = vmul.f32 %v577, %v581
        %v583 = vadd.f32 %v582, 1.0
        %v584 = vmul.f32 %v583, %v568
        %vm585 = vweird.f32 %v132
        %v586 = vand.u32 %v569, 3
        %vm587 = vcmp.lt.s32.totalorder %v586, 2
        %vm588 = vcmp.eq.s32.totalorder %v586, 0
        %v589 = vxor.u32 %v584, 2147483648
        %v590 = vsel %vm588, %v576, %v589
        %vm591 = vcmp.eq.s32.totalorder %v586, 2
        %v592 = vxor.u32 %v576, 2147483648
        %v593 = vsel %vm591, %v592, %v584
        %v594 = vsel %vm587, %v590, %v593
        %v595 = vsel %vm585, nan, %v594
        %v596 = vand.u32 2147483647, %v133
        %vm597 = vcmp.le.f32.partialorder %v596, 0.7853982
        %vm598 = vcmp.lt.s32.totalorder %v133, 0
        %v599 = vand.u32 %v133, 2139095040
        %v600 = vshrl.u32 %v599, 23
        %v601 = vsub.s32 %v600, 127
        %v602 = vand.u32 2147483647, %v133
        %v603 = vand.u32 %v602, 8388607
        %v604 = vor.u32 %v603, 8388608
        %v605 = vsub.s32 0, %v604
        %v606 = vadd.s32 %v601, 1
        %vm607 = vcmp.gt.s32.totalorder %v606, 0
        %v608 = vsel %vm607, %v606, 0
        %v609 = vshrl.u32 %v608, 5
        %v610 = vand.u32 %v608, 31
        %v611 = vsub.s32 32, %v610
        %v612 = vshrl.u32 683565275, %v611
        %v613 = vshll.u32 683565275, %v610
        %v614 = vshrl.u32 2475754826, %v611
        %v615 = vor.u32 %v613, %v614
        %v616 = vshll.u32 2475754826, %v610
        %v617 = vshrl.u32 2131351028, %v611
        %v618 = vor.u32 %v616, %v617
        %v619 = vshll.u32 2131351028, %v610
        %v620 = vshrl.u32 2102212464, %v611
        %v621 = vor.u32 %v619, %v620
        %v622 = vshll.u32 2102212464, %v610
        %v623 = vshrl.u32 920167782, %v611
        %v624 = vor.u32 %v622, %v623
        %v625 = vshll.u32 920167782, %v610
        %v626 = vshrl.u32 1326507024, %v611
        %v627 = vor.u32 %v625, %v626
        %vm628 = vcmp.lt.s32.totalorder %v609, 1
        %vm629 = vcmp.lt.s32.totalorder %v609, 2
        %vm630 = vcmp.lt.s32.totalorder %v609, 3
        %vm631 = vcmp.lt.s32.totalorder %v609, 4
        %v632 = vsel %vm628, %v612, %v615
        %v633 = vsel %vm631, %v621, 2102212464
        %v634 = vsel %vm630, %v618, %v633
        %v635 = vsel %vm629, %v632, %v634
        %v636 = vsel %vm628, %v615, %v618
        %v637 = vsel %vm631, %v624, 920167782
        %v638 = vsel %vm630, %v621, %v637
        %v639 = vsel %vm629, %v636, %v638
        %v640 = vsel %vm628, %v618, %v621
        %v641 = vsel %vm631, %v627, 1326507024
        %v642 = vsel %vm630, %v624, %v641
        %v643 = vsel %vm629, %v640, %v642
        %v644 = vshll.u32 %v604, 8
        %v645 = vand.u32 %v644, 65535
        %v646 = vshrl.u32 %v644, 16
        %v647 = vand.u32 %v643, 65535
        %v648 = vshrl.u32 %v643, 16
        %v649 = vmul.u32 %v645, %v647
        %v650 = vmul.u32 %v645, %v648
        %v651 = vmul.u32 %v646, %v647
        %v652 = vmul.u32 %v646, %v648
        %v653 = vshll.u32 %v650, 16
        %v654 = vshrl.u32 %v650, 16
        %v655 = vshll.u32 %v651, 16
        %v656 = vshrl.u32 %v651, 16
        %vm657 = vc.u32 %v649, %v653
        %v658 = vsel %vm657, 1, 0
        %v659 = vadd.s32 %v649, %v653
        %v660 = vadd.s32 %v652, %v658
        %vm661 = vc.u32 %v659, %v655
        %v662 = vsel %vm661, 1, 0
        %v663 = vadd.s32 %v659, %v655
        %v664 = vadd.s32 %v660, %v662
        %v665 = vadd.s32 %v664, %v654
        %v666 = vadd.s32 %v665, %v656
        %v667 = vand.u32 %v644, 65535
        %v668 = vshrl.u32 %v644, 16
        %v669 = vand.u32 %v639, 65535
        %v670 = vshrl.u32 %v639, 16
        %v671 = vmul.u32 %v667, %v669
        %v672 = vmul.u32 %v667, %v670
        %v673 = vmul.u32 %v668, %v669
        %v674 = vmul.u32 %v668, %v670
        %v675 = vshll.u32 %v672, 16
        %v676 = vshrl.u32 %v672, 16
        %v677 = vshll.u32 %v673, 16
        %v678 = vshrl.u32 %v673, 16
        %vm679 = vc.u32 %v671, %v675
        %v680 = vsel %vm679, 1, 0
        %v681 = vadd.s32 %v671, %v675
        %v682 = vadd.s32 %v674, %v680
        %vm683 = vc.u32 %v681, %v677
        %v684 = vsel %vm683, 1, 0
        %v685 = vadd.s32 %v681, %v677
        %v686 = vadd.s32 %v682, %v684
        %v687 = vadd.s32 %v686, %v676
        %v688 = vadd.s32 %v687, %v678
        %v689 = vmul.u32 %v644, %v635
        %v690 = vadd.s32 %v666, %v685
        %vm691 = vc.u32 %v666, %v685
        %v692 = vadd.s32 %v688, 1
        %v693 = vsel %vm691, %v692, %v688
        %v694 = vadd.s32 %v689, %v693
        %v695 = vadd.s32 %v694, 536870912
        %v696 = vshrl.u32 %v695, 30
        %v697 = vshll.u32 %v696, 30
        %v698 = vsub.s32 %v694, %v697
        %vm699 = vcmp.lt.s32.totalorder %v698, 0
        %v700 = vsub.s32 0, %v698
        %v701 = vsel %vm699, %v700, %v698
        %v702 = vclz %v701
        %v703 = vsub.s32 %v702, 2
        %vm704 = vcmp.gt.s32.totalorder 0, %v703
        %v705 = vsel %vm704, 0, %v703
        %v706 = vsub.s32 32, %v705
        %v707 = vshll.u32 %v698, %v705
        %v708 = vshrl.u32 %v690, %v706
        %v709 = vor.u32 %v707, %v708
        %v710 = vsub.s32 4294967266, %v705
        %v711 = vadd.s32 %v710, 127
        %v712 = vshll.u32 %v711, 23
        %v713 = vor.u32 4788187, %v712
        %v714 = vand.u32 2147483647, %v713
        %v716 = vcvt.s32.f32 %v709
        %v717 = vmul.f32 %v716, %v714
        %v718 = vxor.u32 %v717, 2147483648
        %v719 = vsel %vm598, %v718, %v717
        %v720 = vsub.s32 4, %v696
        %v721 = vsel %vm598, %v720, %v696
        %v722 = vsel %vm597, %v133, %v719
        %v723 = vsel %vm597, 0, %v721
        %v724 = vmul.f32 %v722, %v722
        %v725 = vmul.f32 %v724, -0.001358992
        %v726 = vadd.f32 %v725, 0.041655596
        %v727 = vmul.f32 %v724, %v726
        %v728 = vadd.f32 %v727, -0.4999988
        %v729 = vmul.f32 %v724, %v728
        %v730 = vadd.f32 1.0, %v729
        %v731 = vmul.f32 %v722, %v722
        %v732 = vmul.f32 %v731, -0.00019511016
        %v733 = vadd.f32 %v732, 0.008332121
        %v734 = vmul.f32 %v731, %v733
        %v735 = vadd.f32 %v734, -0.16666654
        %v736 = vmul.f32 %v731, %v735
        %v737 = vadd.f32 %v736, 1.0
        %v738 = vmul.f32 %v737, %v722
        %vm739 = vweird.f32 %v133
        %v740 = vand.u32 %v723, 3
        %vm741 = vcmp.lt.s32.totalorder %v740, 2
        %vm742 = vcmp.eq.s32.totalorder %v740, 0
        %v743 = vxor.u32 %v738, 2147483648
        %v744 = vsel %vm742, %v730, %v743
        %vm745 = vcmp.eq.s32.totalorder %v740, 2
        %v746 = vxor.u32 %v730, 2147483648
        %v747 = vsel %vm745, %v746, %v738
        %v748 = vsel %vm741, %v744, %v747
        %v749 = vsel %vm739, nan, %v748
        %v750 = vand.u32 2147483647, %v130
        %vm751 = vcmp.le.f32.partialorder %v750, 0.7853982
        %vm752 = vcmp.lt.s32.totalorder %v130, 0
        %v753 = vand.u32 %v130, 2139095040
        %v754 = vshrl.u32 %v753, 23
        %v755 = vsub.s32 %v754, 127
        %v756 = vand.u32 2147483647, %v130
        %v757 = vand.u32 %v756, 8388607
        %v758 = vor.u32 %v757, 8388608
        %v759 = vsub.s32 0, %v758
        %v760 = vadd.s32 %v755, 1
        %vm761 = vcmp.gt.s32.totalorder %v760, 0
        %v762 = vsel %vm761, %v760, 0
        %v763 = vshrl.u32 %v762, 5
        %v764 = vand.u32 %v762, 31
        %v765 = vsub.s32 32, %v764
        %v766 = vshrl.u32 683565275, %v765
        %v767 = vshll.u32 683565275, %v764
        %v768 = vshrl.u32 2475754826, %v765
        %v769 = vor.u32 %v767, %v768
        %v770 = vshll.u32 2475754826, %v764
        %v771 = vshrl.u32 2131351028, %v765
        %v772 = vor.u32 %v770, %v771
        %v773 = vshll.u32 2131351028, %v764
        %v774 = vshrl.u32 2102212464, %v765
        %v775 = vor.u32 %v773, %v774
        %v776 = vshll.u32 2102212464, %v764
        %v777 = vshrl.u32 920167782, %v765
        %v778 = vor.u32 %v776, %v777
        %v779 = vshll.u32 920167782, %v764
        %v780 = vshrl.u32 1326507024, %v765
        %v781 = vor.u32 %v779, %v780
        %vm782 = vcmp.lt.s32.totalorder %v763, 1
        %vm783 = vcmp.lt.s32.totalorder %v763, 2
        %vm784 = vcmp.lt.s32.totalorder %v763, 3
        %vm785 = vcmp.lt.s32.totalorder %v763, 4
        %v786 = vsel %vm782, %v766, %v769
        %v787 = vsel %vm785, %v775, 2102212464
        %v788 = vsel %vm784, %v772, %v787
        %v789 = vsel %vm783, %v786, %v788
        %v790 = vsel %vm782, %v769, %v772
        %v791 = vsel %vm785, %v778, 920167782
        %v792 = vsel %vm784, %v775, %v791
        %v793 = vsel %vm783, %v790, %v792
        %v794 = vsel %vm782, %v772, %v775
        %v795 = vsel %vm785, %v781, 1326507024
        %v796 = vsel %vm784, %v778, %v795
        %v797 = vsel %vm783, %v794, %v796
        %v798 = vshll.u32 %v758, 8
        %v799 = vand.u32 %v798, 65535
        %v800 = vshrl.u32 %v798, 16
        %v801 = vand.u32 %v797, 65535
        %v802 = vshrl.u32 %v797, 16
        %v803 = vmul.u32 %v799, %v801
        %v804 = vmul.u32 %v799, %v802
        %v805 = vmul.u32 %v800, %v801
        %v806 = vmul.u32 %v800, %v802
        %v807 = vshll.u32 %v804, 16
        %v808 = vshrl.u32 %v804, 16
        %v809 = vshll.u32 %v805, 16
        %v810 = vshrl.u32 %v805, 16
        %vm811 = vc.u32 %v803, %v807
        %v812 = vsel %vm811, 1, 0
        %v813 = vadd.s32 %v803, %v807
        %v814 = vadd.s32 %v806, %v812
        %vm815 = vc.u32 %v813, %v809
        %v816 = vsel %vm815, 1, 0
        %v817 = vadd.s32 %v813, %v809
        %v818 = vadd.s32 %v814, %v816
        %v819 = vadd.s32 %v818, %v808
        %v820 = vadd.s32 %v819, %v810
        %v821 = vand.u32 %v798, 65535
        %v822 = vshrl.u32 %v798, 16
        %v823 = vand.u32 %v793, 65535
        %v824 = vshrl.u32 %v793, 16
        %v825 = vmul.u32 %v821, %v823
        %v826 = vmul.u32 %v821, %v824
        %v827 = vmul.u32 %v822, %v823
        %v828 = vmul.u32 %v822, %v824
        %v829 = vshll.u32 %v826, 16
        %v830 = vshrl.u32 %v826, 16
        %v831 = vshll.u32 %v827, 16
        %v832 = vshrl.u32 %v827, 16
        %vm833 = vc.u32 %v825, %v829
        %v834 = vsel %vm833, 1, 0
        %v835 = vadd.s32 %v825, %v829
        %v836 = vadd.s32 %v828, %v834
        %vm837 = vc.u32 %v835, %v831
        %v838 = vsel %vm837, 1, 0
        %v839 = vadd.s32 %v835, %v831
        %v840 = vadd.s32 %v836, %v838
        %v841 = vadd.s32 %v840, %v830
        %v842 = vadd.s32 %v841, %v832
        %v843 = vmul.u32 %v798, %v789
        %v844 = vadd.s32 %v820, %v839
        %vm845 = vc.u32 %v820, %v839
        %v846 = vadd.s32 %v842, 1
        %v847 = vsel %vm845, %v846, %v842
        %v848 = vadd.s32 %v843, %v847
        %v849 = vadd.s32 %v848, 536870912
        %v850 = vshrl.u32 %v849, 30
        %v851 = vshll.u32 %v850, 30
        %v852 = vsub.s32 %v848, %v851
        %vm853 = vcmp.lt.s32.totalorder %v852, 0
        %v854 = vsub.s32 0, %v852
        %v855 = vsel %vm853, %v854, %v852
        %v856 = vclz %v855
        %v857 = vsub.s32 %v856, 2
        %vm858 = vcmp.gt.s32.totalorder 0, %v857
        %v859 = vsel %vm858, 0, %v857
        %v860 = vsub.s32 32, %v859
        %v861 = vshll.u32 %v852, %v859
        %v862 = vshrl.u32 %v844, %v860
        %v863 = vor.u32 %v861, %v862
        %v864 = vsub.s32 4294967266, %v859
        %v865 = vadd.s32 %v864, 127
        %v866 = vshll.u32 %v865, 23
        %v867 = vor.u32 4788187, %v866
        %v868 = vand.u32 2147483647, %v867
        %v870 = vcvt.s32.f32 %v863
        %v871 = vmul.f32 %v870, %v868
        %v872 = vxor.u32 %v871, 2147483648
        %v873 = vsel %vm752, %v872, %v871
        %v874 = vsub.s32 4, %v850
        %v875 = vsel %vm752, %v874, %v850
        %v876 = vsel %vm751, %v130, %v873
        %v877 = vsel %vm751, 0, %v875
        %v878 = vmul.f32 %v876, %v876
        %v879 = vmul.f32 %v878, -0.001358992
        %v880 = vadd.f32 %v879, 0.041655596
        %v881 = vmul.f32 %v878, %v880
        %v882 = vadd.f32 %v881, -0.4999988
        %v883 = vmul.f32 %v878, %v882
        %v884 = vadd.f32 1.0, %v883
        %v885 = vmul.f32 %v876, %v876
        %v886 = vmul.f32 %v885, -0.00019511016
        %v887 = vadd.f32 %v886, 0.008332121
        %v888 = vmul.f32 %v885, %v887
        %v889 = vadd.f32 %v888, -0.16666654
        %v890 = vmul.f32 %v885, %v889
        %v891 = vadd.f32 %v890, 1.0
        %v892 = vmul.f32 %v891, %v876
        %vm893 = vweird.f32 %v130
        %v894 = vadd.s32 %v877, 3
        %v895 = vand.u32 %v894, 3
        %vm896 = vcmp.lt.s32.totalorder %v895, 2
        %vm897 = vcmp.eq.s32.totalorder %v895, 0
        %v898 = vxor.u32 %v892, 2147483648
        %v899 = vsel %vm897, %v884, %v898
        %vm900 = vcmp.eq.s32.totalorder %v895, 2
        %v901 = vxor.u32 %v884, 2147483648
        %v902 = vsel %vm900, %v901, %v892
        %v903 = vsel %vm896, %v899, %v902
        %v904 = vsel %vm893, nan, %v903
        %v905 = vand.u32 2147483647, %v131
        %vm906 = vcmp.le.f32.partialorder %v905, 0.7853982
        %vm907 = vcmp.lt.s32.totalorder %v131, 0
        %v908 = vand.u32 %v131, 2139095040
        %v909 = vshrl.u32 %v908, 23
        %v910 = vsub.s32 %v909, 127
        %v911 = vand.u32 2147483647, %v131
        %v912 = vand.u32 %v911, 8388607
        %v913 = vor.u32 %v912, 8388608
        %v914 = vsub.s32 0, %v913
        %v915 = vadd.s32 %v910, 1
        %vm916 = vcmp.gt.s32.totalorder %v915, 0
        %v917 = vsel %vm916, %v915, 0
        %v918 = vshrl.u32 %v917, 5
        %v919 = vand.u32 %v917, 31
        %v920 = vsub.s32 32, %v919
        %v921 = vshrl.u32 683565275, %v920
        %v922 = vshll.u32 683565275, %v919
        %v923 = vshrl.u32 2475754826, %v920
        %v924 = vor.u32 %v922, %v923
        %v925 = vshll.u32 2475754826, %v919
        %v926 = vshrl.u32 2131351028, %v920
        %v927 = vor.u32 %v925, %v926
        %v928 = vshll.u32 2131351028, %v919
        %v929 = vshrl.u32 2102212464, %v920
        %v930 = vor.u32 %v928, %v929
        %v931 = vshll.u32 2102212464, %v919
        %v932 = vshrl.u32 920167782, %v920
        %v933 = vor.u32 %v931, %v932
        %v934 = vshll.u32 920167782, %v919
        %v935 = vshrl.u32 1326507024, %v920
        %v936 = vor.u32 %v934, %v935
        %vm937 = vcmp.lt.s32.totalorder %v918, 1
        %vm938 = vcmp.lt.s32.totalorder %v918, 2
        %vm939 = vcmp.lt.s32.totalorder %v918, 3
        %vm940 = vcmp.lt.s32.totalorder %v918, 4
        %v941 = vsel %vm937, %v921, %v924
        %v942 = vsel %vm940, %v930, 2102212464
        %v943 = vsel %vm939, %v927, %v942
        %v944 = vsel %vm938, %v941, %v943
        %v945 = vsel %vm937, %v924, %v927
        %v946 = vsel %vm940, %v933, 920167782
        %v947 = vsel %vm939, %v930, %v946
        %v948 = vsel %vm938, %v945, %v947
        %v949 = vsel %vm937, %v927, %v930
        %v950 = vsel %vm940, %v936, 1326507024
        %v951 = vsel %vm939, %v933, %v950
        %v952 = vsel %vm938, %v949, %v951
        %v953 = vshll.u32 %v913, 8
        %v954 = vand.u32 %v953, 65535
        %v955 = vshrl.u32 %v953, 16
        %v956 = vand.u32 %v952, 65535
        %v957 = vshrl.u32 %v952, 16
        %v958 = vmul.u32 %v954, %v956
        %v959 = vmul.u32 %v954, %v957
        %v960 = vmul.u32 %v955, %v956
        %v961 = vmul.u32 %v955, %v957
        %v962 = vshll.u32 %v959, 16
        %v963 = vshrl.u32 %v959, 16
        %v964 = vshll.u32 %v960, 16
        %v965 = vshrl.u32 %v960, 16
        %vm966 = vc.u32 %v958, %v962
        %v967 = vsel %vm966, 1, 0
        %v968 = vadd.s32 %v958, %v962
        %v969 = vadd.s32 %v961, %v967
        %vm970 = vc.u32 %v968, %v964
        %v971 = vsel %vm970, 1, 0
        %v972 = vadd.s32 %v968, %v964
        %v973 = vadd.s32 %v969, %v971
        %v974 = vadd.s32 %v973, %v963
        %v975 = vadd.s32 %v974, %v965
        %v976 = vand.u32 %v953, 65535
        %v977 = vshrl.u32 %v953, 16
        %v978 = vand.u32 %v948, 65535
        %v979 = vshrl.u32 %v948, 16
        %v980 = vmul.u32 %v976, %v978
        %v981 = vmul.u32 %v976, %v979
        %v982 = vmul.u32 %v977, %v978
        %v983 = vmul.u32 %v977, %v979
        %v984 = vshll.u32 %v981, 16
        %v985 = vshrl.u32 %v981, 16
        %v986 = vshll.u32 %v982, 16
        %v987 = vshrl.u32 %v982, 16
        %vm988 = vc.u32 %v980, %v984
        %v989 = vsel %vm988, 1, 0
        %v990 = vadd.s32 %v980, %v984
        %v991 = vadd.s32 %v983, %v989
        %vm992 = vc.u32 %v990, %v986
        %v993 = vsel %vm992, 1, 0
        %v994 = vadd.s32 %v990, %v986
        %v995 = vadd.s32 %v991, %v993
        %v996 = vadd.s32 %v995, %v985
        %v997 = vadd.s32 %v996, %v987
        %v998 = vmul.u32 %v953, %v944
        %v999 = vadd.s32 %v975, %v994
        %vm1000 = vc.u32 %v975, %v994
        %v1001 = vadd.s32 %v997, 1
        %v1002 = vsel %vm1000, %v1001, %v997
        %v1003 = vadd.s32 %v998, %v1002
        %v1004 = vadd.s32 %v1003, 536870912
        %v1005 = vshrl.u32 %v1004, 30
        %v1006 = vshll.u32 %v1005, 30
        %v1007 = vsub.s32 %v1003, %v1006
        %vm1008 = vcmp.lt.s32.totalorder %v1007, 0
        %v1009 = vsub.s32 0, %v1007
        %v1010 = vsel %vm1008, %v1009, %v1007
        %v1011 = vclz %v1010
        %v1012 = vsub.s32 %v1011, 2
        %vm1013 = vcmp.gt.s32.totalorder 0, %v1012
        %v1014 = vsel %vm1013, 0, %v1012
        %v1015 = vsub.s32 32, %v1014
        %v1016 = vshll.u32 %v1007, %v1014
        %v1017 = vshrl.u32 %v999, %v1015
        %v1018 = vor.u32 %v1016, %v1017
        %v1019 = vsub.s32 4294967266, %v1014
        %v1020 = vadd.s32 %v1019, 127
        %v1021 = vshll.u32 %v1020, 23
        %v1022 = vor.u32 4788187, %v1021
        %v1023 = vand.u32 2147483647, %v1022
        %v1025 = vcvt.s32.f32 %v1018
        %v1026 = vmul.f32 %v1025, %v1023
        %v1027 = vxor.u32 %v1026, 2147483648
        %v1028 = vsel %vm907, %v1027, %v1026
        %v1029 = vsub.s32 4, %v1005
        %v1030 = vsel %vm907, %v1029, %v1005
        %v1031 = vsel %vm906, %v131, %v1028
        %v1032 = vsel %vm906, 0, %v1030
        %v1033 = vmul.f32 %v1031, %v1031
        %v1034 = vmul.f32 %v1033, -0.001358992
        %v1035 = vadd.f32 %v1034, 0.041655596
        %v1036 = vmul.f32 %v1033, %v1035
        %v1037 = vadd.f32 %v1036, -0.4999988
        %v1038 = vmul.f32 %v1033, %v1037
        %v1039 = vadd.f32 1.0, %v1038
        %v1040 = vmul.f32 %v1031, %v1031
        %v1041 = vmul.f32 %v1040, -0.00019511016
        %v1042 = vadd.f32 %v1041, 0.008332121
        %v1043 = vmul.f32 %v1040, %v1042
        %v1044 = vadd.f32 %v1043, -0.16666654
        %v1045 = vmul.f32 %v1040, %v1044
        %v1046 = vadd.f32 %v1045, 1.0
        %v1047 = vmul.f32 %v1046, %v1031
        %vm1048 = vweird.f32 %v131
        %v1049 = vadd.s32 %v1032, 3
        %v1050 = vand.u32 %v1049, 3
        %vm1051 = vcmp.lt.s32.totalorder %v1050, 2
        %vm1052 = vcmp.eq.s32.totalorder %v1050, 0
        %v1053 = vxor.u32 %v1047, 2147483648
        %v1054 = vsel %vm1052, %v1039, %v1053
        %vm1055 = vcmp.eq.s32.totalorder %v1050, 2
        %v1056 = vxor.u32 %v1039, 2147483648
        %v1057 = vsel %vm1055, %v1056, %v1047
        %v1058 = vsel %vm1051, %v1054, %v1057
        %v1059 = vsel %vm1048, nan, %v1058
        %v1060 = vand.u32 2147483647, %v132
        %vm1061 = vcmp.le.f32.partialorder %v1060, 0.7853982
        %vm1062 = vcmp.lt.s32.totalorder %v132, 0
        %v1063 = vand.u32 %v132, 2139095040
        %v1064 = vshrl.u32 %v1063, 23
        %v1065 = vsub.s32 %v1064, 127
        %v1066 = vand.u32 2147483647, %v132
        %v1067 = vand.u32 %v1066, 8388607
        %v1068 = vor.u32 %v1067, 8388608
        %v1069 = vsub.s32 0, %v1068
        %v1070 = vadd.s32 %v1065, 1
        %vm1071 = vcmp.gt.s32.totalorder %v1070, 0
        %v1072 = vsel %vm1071, %v1070, 0
        %v1073 = vshrl.u32 %v1072, 5
        %v1074 = vand.u32 %v1072, 31
        %v1075 = vsub.s32 32, %v1074
        %v1076 = vshrl.u32 683565275, %v1075
        %v1077 = vshll.u32 683565275, %v1074
        %v1078 = vshrl.u32 2475754826, %v1075
        %v1079 = vor.u32 %v1077, %v1078
        %v1080 = vshll.u32 2475754826, %v1074
        %v1081 = vshrl.u32 2131351028, %v1075
        %v1082 = vor.u32 %v1080, %v1081
        %v1083 = vshll.u32 2131351028, %v1074
        %v1084 = vshrl.u32 2102212464, %v1075
        %v1085 = vor.u32 %v1083, %v1084
        %v1086 = vshll.u32 2102212464, %v1074
        %v1087 = vshrl.u32 920167782, %v1075
        %v1088 = vor.u32 %v1086, %v1087
        %v1089 = vshll.u32 920167782, %v1074
        %v1090 = vshrl.u32 1326507024, %v1075
        %v1091 = vor.u32 %v1089, %v1090
        %vm1092 = vcmp.lt.s32.totalorder %v1073, 1
        %vm1093 = vcmp.lt.s32.totalorder %v1073, 2
        %vm1094 = vcmp.lt.s32.totalorder %v1073, 3
        %vm1095 = vcmp.lt.s32.totalorder %v1073, 4
        %v1096 = vsel %vm1092, %v1076, %v1079
        %v1097 = vsel %vm1095, %v1085, 2102212464
        %v1098 = vsel %vm1094, %v1082, %v1097
        %v1099 = vsel %vm1093, %v1096, %v1098
        %v1100 = vsel %vm1092, %v1079, %v1082
        %v1101 = vsel %vm1095, %v1088, 920167782
        %v1102 = vsel %vm1094, %v1085, %v1101
        %v1103 = vsel %vm1093, %v1100, %v1102
        %v1104 = vsel %vm1092, %v1082, %v1085
        %v1105 = vsel %vm1095, %v1091, 1326507024
        %v1106 = vsel %vm1094, %v1088, %v1105
        %v1107 = vsel %vm1093, %v1104, %v1106
        %v1108 = vshll.u32 %v1068, 8
        %v1109 = vand.u32 %v1108, 65535
        %v1110 = vshrl.u32 %v1108, 16
        %v1111 = vand.u32 %v1107, 65535
        %v1112 = vshrl.u32 %v1107, 16
        %v1113 = vmul.u32 %v1109, %v1111
        %v1114 = vmul.u32 %v1109, %v1112
        %v1115 = vmul.u32 %v1110, %v1111
        %v1116 = vmul.u32 %v1110, %v1112
        %v1117 = vshll.u32 %v1114, 16
        %v1118 = vshrl.u32 %v1114, 16
        %v1119 = vshll.u32 %v1115, 16
        %v1120 = vshrl.u32 %v1115, 16
        %vm1121 = vc.u32 %v1113, %v1117
        %v1122 = vsel %vm1121, 1, 0
        %v1123 = vadd.s32 %v1113, %v1117
        %v1124 = vadd.s32 %v1116, %v1122
        %vm1125 = vc.u32 %v1123, %v1119
        %v1126 = vsel %vm1125, 1, 0
        %v1127 = vadd.s32 %v1123, %v1119
        %v1128 = vadd.s32 %v1124, %v1126
        %v1129 = vadd.s32 %v1128, %v1118
        %v1130 = vadd.s32 %v1129, %v1120
        %v1131 = vand.u32 %v1108, 65535
        %v1132 = vshrl.u32 %v1108, 16
        %v1133 = vand.u32 %v1103, 65535
        %v1134 = vshrl.u32 %v1103, 16
        %v1135 = vmul.u32 %v1131, %v1133
        %v1136 = vmul.u32 %v1131, %v1134
        %v1137 = vmul.u32 %v1132, %v1133
        %v1138 = vmul.u32 %v1132, %v1134
        %v1139 = vshll.u32 %v1136, 16
        %v1140 = vshrl.u32 %v1136, 16
        %v1141 = vshll.u32 %v1137, 16
        %v1142 = vshrl.u32 %v1137, 16
        %vm1143 = vc.u32 %v1135, %v1139
        %v1144 = vsel %vm1143, 1, 0
        %v1145 = vadd.s32 %v1135, %v1139
        %v1146 = vadd.s32 %v1138, %v1144
        %vm1147 = vc.u32 %v1145, %v1141
        %v1148 = vsel %vm1147, 1, 0
        %v1149 = vadd.s32 %v1145, %v1141
        %v1150 = vadd.s32 %v1146, %v1148
        %v1151 = vadd.s32 %v1150, %v1140
        %v1152 = vadd.s32 %v1151, %v1142
        %v1153 = vmul.u32 %v1108, %v1099
        %v1154 = vadd.s32 %v1130, %v1149
        %vm1155 = vc.u32 %v1130, %v1149
        %v1156 = vadd.s32 %v1152, 1
        %v1157 = vsel %vm1155, %v1156, %v1152
        %v1158 = vadd.s32 %v1153, %v1157
        %v1159 = vadd.s32 %v1158, 536870912
        %v1160 = vshrl.u32 %v1159, 30
        %v1161 = vshll.u32 %v1160, 30
        %v1162 = vsub.s32 %v1158, %v1161
        %vm1163 = vcmp.lt.s32.totalorder %v1162, 0
        %v1164 = vsub.s32 0, %v1162
        %v1165 = vsel %vm1163, %v1164, %v1162
        %v1166 = vclz %v1165
        %v1167 = vsub.s32 %v1166, 2
        %vm1168 = vcmp.gt.s32.totalorder 0, %v1167
        %v1169 = vsel %vm1168, 0, %v1167
        %v1170 = vsub.s32 32, %v1169
        %v1171 = vshll.u32 %v1162, %v1169
        %v1172 = vshrl.u32 %v1154, %v1170
        %v1173 = vor.u32 %v1171, %v1172
        %v1174 = vsub.s32 4294967266, %v1169
        %v1175 = vadd.s32 %v1174, 127
        %v1176 = vshll.u32 %v1175, 23
        %v1177 = vor.u32 4788187, %v1176
        %v1178 = vand.u32 2147483647, %v1177
        %v1180 = vcvt.s32.f32 %v1173
        %v1181 = vmul.f32 %v1180, %v1178
        %v1182 = vxor.u32 %v1181, 2147483648
        %v1183 = vsel %vm1062, %v1182, %v1181
        %v1184 = vsub.s32 4, %v1160
        %v1185 = vsel %vm1062, %v1184, %v1160
        %v1186 = vsel %vm1061, %v132, %v1183
        %v1187 = vsel %vm1061, 0, %v1185
        %v1188 = vmul.f32 %v1186, %v1186
        %v1189 = vmul.f32 %v1188, -0.001358992
        %v1190 = vadd.f32 %v1189, 0.041655596
        %v1191 = vmul.f32 %v1188, %v1190
        %v1192 = vadd.f32 %v1191, -0.4999988
        %v1193 = vmul.f32 %v1188, %v1192
        %v1194 = vadd.f32 1.0, %v1193
        %v1195 = vmul.f32 %v1186, %v1186
        %v1196 = vmul.f32 %v1195, -0.00019511016
        %v1197 = vadd.f32 %v1196, 0.008332121
        %v1198 = vmul.f32 %v1195, %v1197
        %v1199 = vadd.f32 %v1198, -0.16666654
        %v1200 = vmul.f32 %v1195, %v1199
        %v1201 = vadd.f32 %v1200, 1.0
        %v1202 = vmul.f32 %v1201, %v1186
        %vm1203 = vweird.f32 %v132
        %v1204 = vadd.s32 %v1187, 3
        %v1205 = vand.u32 %v1204, 3
        %vm1206 = vcmp.lt.s32.totalorder %v1205, 2
        %vm1207 = vcmp.eq.s32.totalorder %v1205, 0
        %v1208 = vxor.u32 %v1202, 2147483648
        %v1209 = vsel %vm1207, %v1194, %v1208
        %vm1210 = vcmp.eq.s32.totalorder %v1205, 2
        %v1211 = vxor.u32 %v1194, 2147483648
        %v1212 = vsel %vm1210, %v1211, %v1202
        %v1213 = vsel %vm1206, %v1209, %v1212
        %v1214 = vsel %vm1203, nan, %v1213
        %v1215 = vand.u32 2147483647, %v133
        %vm1216 = vcmp.le.f32.partialorder %v1215, 0.7853982
        %vm1217 = vcmp.lt.s32.totalorder %v133, 0
        %v1218 = vand.u32 %v133, 2139095040
        %v1219 = vshrl.u32 %v1218, 23
        %v1220 = vsub.s32 %v1219, 127
        %v1221 = vand.u32 2147483647, %v133
        %v1222 = vand.u32 %v1221, 8388607
        %v1223 = vor.u32 %v1222, 8388608
        %v1224 = vsub.s32 0, %v1223
        %v1225 = vadd.s32 %v1220, 1
        %vm1226 = vcmp.gt.s32.totalorder %v1225, 0
        %v1227 = vsel %vm1226, %v1225, 0
        %v1228 = vshrl.u32 %v1227, 5
        %v1229 = vand.u32 %v1227, 31
        %v1230 = vsub.s32 32, %v1229
        %v1231 = vshrl.u32 683565275, %v1230
        %v1232 = vshll.u32 683565275, %v1229
        %v1233 = vshrl.u32 2475754826, %v1230
        %v1234 = vor.u32 %v1232, %v1233
        %v1235 = vshll.u32 2475754826, %v1229
        %v1236 = vshrl.u32 2131351028, %v1230
        %v1237 = vor.u32 %v1235, %v1236
        %v1238 = vshll.u32 2131351028, %v1229
        %v1239 = vshrl.u32 2102212464, %v1230
        %v1240 = vor.u32 %v1238, %v1239
        %v1241 = vshll.u32 2102212464, %v1229
        %v1242 = vshrl.u32 920167782, %v1230
        %v1243 = vor.u32 %v1241, %v1242
        %v1244 = vshll.u32 920167782, %v1229
        %v1245 = vshrl.u32 1326507024, %v1230
        %v1246 = vor.u32 %v1244, %v1245
        %vm1247 = vcmp.lt.s32.totalorder %v1228, 1
        %vm1248 = vcmp.lt.s32.totalorder %v1228, 2
        %vm1249 = vcmp.lt.s32.totalorder %v1228, 3
        %vm1250 = vcmp.lt.s32.totalorder %v1228, 4
        %v1251 = vsel %vm1247, %v1231, %v1234
        %v1252 = vsel %vm1250, %v1240, 2102212464
        %v1253 = vsel %vm1249, %v1237, %v1252
        %v1254 = vsel %vm1248, %v1251, %v1253
        %v1255 = vsel %vm1247, %v1234, %v1237
        %v1256 = vsel %vm1250, %v1243, 920167782
        %v1257 = vsel %vm1249, %v1240, %v1256
        %v1258 = vsel %vm1248, %v1255, %v1257
        %v1259 = vsel %vm1247, %v1237, %v1240
        %v1260 = vsel %vm1250, %v1246, 1326507024
        %v1261 = vsel %vm1249, %v1243, %v1260
        %v1262 = vsel %vm1248, %v1259, %v1261
        %v1263 = vshll.u32 %v1223, 8
        %v1264 = vand.u32 %v1263, 65535
        %v1265 = vshrl.u32 %v1263, 16
        %v1266 = vand.u32 %v1262, 65535
        %v1267 = vshrl.u32 %v1262, 16
        %v1268 = vmul.u32 %v1264, %v1266
        %v1269 = vmul.u32 %v1264, %v1267
        %v1270 = vmul.u32 %v1265, %v1266
        %v1271 = vmul.u32 %v1265, %v1267
        %v1272 = vshll.u32 %v1269, 16
        %v1273 = vshrl.u32 %v1269, 16
        %v1274 = vshll.u32 %v1270, 16
        %v1275 = vshrl.u32 %v1270, 16
        %vm1276 = vc.u32 %v1268, %v1272
        %v1277 = vsel %vm1276, 1, 0
        %v1278 = vadd.s32 %v1268, %v1272
        %v1279 = vadd.s32 %v1271, %v1277
        %vm1280 = vc.u32 %v1278, %v1274
        %v1281 = vsel %vm1280, 1, 0
        %v1282 = vadd.s32 %v1278, %v1274
        %v1283 = vadd.s32 %v1279, %v1281
        %v1284 = vadd.s32 %v1283, %v1273
        %v1285 = vadd.s32 %v1284, %v1275
        %v1286 = vand.u32 %v1263, 65535
        %v1287 = vshrl.u32 %v1263, 16
        %v1288 = vand.u32 %v1258, 65535
        %v1289 = vshrl.u32 %v1258, 16
        %v1290 = vmul.u32 %v1286, %v1288
        %v1291 = vmul.u32 %v1286, %v1289
        %v1292 = vmul.u32 %v1287, %v1288
        %v1293 = vmul.u32 %v1287, %v1289
        %v1294 = vshll.u32 %v1291, 16
        %v1295 = vshrl.u32 %v1291, 16
        %v1296 = vshll.u32 %v1292, 16
        %v1297 = vshrl.u32 %v1292, 16
        %vm1298 = vc.u32 %v1290, %v1294
        %v1299 = vsel %vm1298, 1, 0
        %v1300 = vadd.s32 %v1290, %v1294
        %v1301 = vadd.s32 %v1293, %v1299
        %vm1302 = vc.u32 %v1300, %v1296
        %v1303 = vsel %vm1302, 1, 0
        %v1304 = vadd.s32 %v1300, %v1296
        %v1305 = vadd.s32 %v1301, %v1303
        %v1306 = vadd.s32 %v1305, %v1295
        %v1307 = vadd.s32 %v1306, %v1297
        %v1308 = vmul.u32 %v1263, %v1254
        %v1309 = vadd.s32 %v1285, %v1304
        %vm1310 = vc.u32 %v1285, %v1304
        %v1311 = vadd.s32 %v1307, 1
        %v1312 = vsel %vm1310, %v1311, %v1307
        %v1313 = vadd.s32 %v1308, %v1312
        %v1314 = vadd.s32 %v1313, 536870912
        %v1315 = vshrl.u32 %v1314, 30
        %v1316 = vshll.u32 %v1315, 30
        %v1317 = vsub.s32 %v1313, %v1316
        %vm1318 = vcmp.lt.s32.totalorder %v1317, 0
        %v1319 = vsub.s32 0, %v1317
        %v1320 = vsel %vm1318, %v1319, %v1317
        %v1321 = vclz %v1320
        %v1322 = vsub.s32 %v1321, 2
        %vm1323 = vcmp.gt.s32.totalorder 0, %v1322
        %v1324 = vsel %vm1323, 0, %v1322
        %v1325 = vsub.s32 32, %v1324
        %v1326 = vshll.u32 %v1317, %v1324
        %v1327 = vshrl.u32 %v1309, %v1325
        %v1328 = vor.u32 %v1326, %v1327
        %v1329 = vsub.s32 4294967266, %v1324
        %v1330 = vadd.s32 %v1329, 127
        %v1331 = vshll.u32 %v1330, 23
        %v1332 = vor.u32 4788187, %v1331
        %v1333 = vand.u32 2147483647, %v1332
        %v1335 = vcvt.s32.f32 %v1328
        %v1336 = vmul.f32 %v1335, %v1333
        %v1337 = vxor.u32 %v1336, 2147483648
        %v1338 = vsel %vm1217, %v1337, %v1336
        %v1339 = vsub.s32 4, %v1315
        %v1340 = vsel %vm1217, %v1339, %v1315
        %v1341 = vsel %vm1216, %v133, %v1338
        %v1342 = vsel %vm1216, 0, %v1340
        %v1343 = vmul.f32 %v1341, %v1341
        %v1344 = vmul.f32 %v1343, -0.001358992
        %v1345 = vadd.f32 %v1344, 0.041655596
        %v1346 = vmul.f32 %v1343, %v1345
        %v1347 = vadd.f32 %v1346, -0.4999988
        %v1348 = vmul.f32 %v1343, %v1347
        %v1349 = vadd.f32 1.0, %v1348
        %v1350 = vmul.f32 %v1341, %v1341
        %v1351 = vmul.f32 %v1350, -0.00019511016
        %v1352 = vadd.f32 %v1351, 0.008332121
        %v1353 = vmul.f32 %v1350, %v1352
        %v1354 = vadd.f32 %v1353, -0.16666654
        %v1355 = vmul.f32 %v1350, %v1354
        %v1356 = vadd.f32 %v1355, 1.0
        %v1357 = vmul.f32 %v1356, %v1341
        %vm1358 = vweird.f32 %v133
        %v1359 = vadd.s32 %v1342, 3
        %v1360 = vand.u32 %v1359, 3
        %vm1361 = vcmp.lt.s32.totalorder %v1360, 2
        %vm1362 = vcmp.eq.s32.totalorder %v1360, 0
        %v1363 = vxor.u32 %v1357, 2147483648
        %v1364 = vsel %vm1362, %v1349, %v1363
        %vm1365 = vcmp.eq.s32.totalorder %v1360, 2
        %v1366 = vxor.u32 %v1349, 2147483648
        %v1367 = vsel %vm1365, %v1366, %v1357
        %v1368 = vsel %vm1361, %v1364, %v1367
        %v1369 = vsel %vm1358, nan, %v1368
        %1374 = vrot.lane.b32.xlu0 %v904, 64
        %v1375 = vpop.permute.xlu0 %1374
        %1376 = vrot.lane.b32.xlu0 %v1059, 64
        %v1377 = vpop.permute.xlu0 %1376
        %1378 = vrot.lane.b32.xlu0 %v1214, 64
        %v1379 = vpop.permute.xlu0 %1378
        %1380 = vrot.lane.b32.xlu0 %v1369, 64
        %v1381 = vpop.permute.xlu0 %1380
        %vm1386 = vcmask 523264
        %v1387 = vsel %vm1386, %v287, %v1375
        %v1388 = vsel %vm1386, %v441, %v1377
        %v1389 = vsel %vm1386, %v595, %v1379
        %v1390 = vsel %vm1386, %v749, %v1381
        %1391 = vst [vmem:[%s109] sm:$0xff] %v1387
        %1392 = vst [vmem:[%s109 + $0x8] sm:$0xff] %v1388
        %1393 = vst [vmem:[%s109 + $0x10] sm:$0xff] %v1389
        %1394 = vst [vmem:[%s109 + $0x18] sm:$0xff] %v1390
        %s1395 = sand.u32 %s45, 1
        %s1396 = scalar_lea.sflag [#allocation4], %s1395
        %s1397 = sand.u32 %s45, 1
        %s1398 = smul.addr %s1397, 32
        %s1399 = scalar_lea.vmem [#allocation5], %s1398
        // Predicated region
        $region29: #{tpu_custom_call.1} parent=23 // pred_check
          %p1400 = pneg %p55
        $region30: #{tpu_custom_call.1} parent=23 // pred_check_branch
          %1402 = sbr.rel (%p1400) target = $region32
        $region31: #{tpu_custom_call.1} parent=23 // pred_region
          %s1403 = smul.u32 4, %s16
          %1405 = vsyncadd %s1396, 0
          %s1406 = smul.addr %s1403, 8
          %s1407 = scalar_lea.hbm %s1, %s1406
          %s1408 = sshll.u32 %s1399, 4
          %s1409 = int_to_ptr.vmem [resolvable:$true] %s1408
          %s1410 = sshll.u32 %s1407, 4
          %s1411 = int_to_ptr.hbm [resolvable:$true] %s1410
          %1416 = dma.vmem_to_hbm [thread:$0]  %s1409, 512, %s1411, %s1396, 128, 128, 8
        $region32: #{tpu_custom_call.1} parent=23 // pred_fallthru
          _
      $region24: #{tpu_custom_call.1} parent=5 // pred_fallthru
        _
      %p1417 = scmp.le.s32.totalorder 2, %s11
      // Predicated region
      $region33: #{tpu_custom_call.1} parent=5 // pred_check
        %p1418 = pneg %p1417
      $region34: #{tpu_custom_call.1} parent=5 // pred_check_branch
        %1420 = sbr.rel (%p1418) target = $region36
      $region35: #{tpu_custom_call.1} parent=5 // pred_region
        %s1421 = ssub.s32 %s11, 2
        // Predicated region
        $region37: #{tpu_custom_call.1} parent=35 // pred_check
          %p1422 = pneg %p61
        $region38: #{tpu_custom_call.1} parent=35 // pred_check_branch
          %1424 = sbr.rel (%p1422) target = $region40
        $region39: #{tpu_custom_call.1} parent=35 // pred_region
          %s1425 = sand.u32 %s46, 1
          %s1426 = scalar_lea.sflag [#allocation4], %s1425
          %s1427 = sand.u32 %s46, 1
          %s1428 = smul.addr %s1427, 32
          %s1429 = scalar_lea.vmem [#allocation5], %s1428
          %1431 = dma.done %s1426, 512
        $region40: #{tpu_custom_call.1} parent=35 // pred_fallthru
          _
      $region36: #{tpu_custom_call.1} parent=5 // pred_fallthru
        _
    $region6: #{tpu_custom_call.1} parent=1 // loop_footer
      %s15 = sadd.s32 1, %s11
    $region7: #{tpu_custom_call.1} parent=1 // loop_footer_branch
      %10 = sbr.rel target = $region3
    $region8: #{tpu_custom_call.1} parent=1 // loop_exit
      _
    %1432 = vsyncpa [#allocation3], 1
    %s1433 = scalar_lea.sflag [#allocation3], 1
    %1434 = vsyncpa %s1433, 1
    %1435 = vsyncpa [#allocation4], 1
    %s1436 = scalar_lea.sflag [#allocation4], 1
    %1437 = vsyncpa %s1436, 1

</llo_original>
